<compile_context>
chip_gen: v7x
topology: tpu7x:2x2x1
jax: 0.10.0
libtpu: 0.0.40
codegen_flags: <defaults>
</compile_context>

<pallas_src>
import functools

import jax
import jax.numpy as jnp
from jax.experimental import pallas as pl
from jax.experimental.pallas import tpu as pltpu


# ---------------------------------------------------------------------------
# Helpers
# ---------------------------------------------------------------------------
def _round_up(v, m):
    return (v + m - 1) // m * m


def _sublane_multiple(dtype):
    # 8 rows per sublane tile for 4-byte types, 16 for bf16, 32 for int8.
    return max(8, 32 // jnp.dtype(dtype).itemsize)


def _vmem_capacity_bytes():
    try:
        cap = int(getattr(pltpu.get_tpu_info(), "vmem_capacity_bytes", 0) or 0)
    except Exception:
        cap = 0
    return cap if cap > 0 else 64 * 1024 * 1024   # conservative (v7x) fallback


def _epilogue(y, b_ref, o_ref, normalize):
    """bias add + optional l2-normalize (== F.normalize eps=1e-12) + store."""
    if b_ref is not None:
        y = y + b_ref[...].astype(jnp.float32)
    if normalize:
        ssq = jnp.sum(y * y, axis=-1, keepdims=True)
        y = y * jax.lax.rsqrt(jnp.maximum(ssq, 1e-24))   # y / max(||y||, 1e-12)
    o_ref[...] = y.astype(o_ref.dtype)


# ---------------------------------------------------------------------------
# Kernels
# ---------------------------------------------------------------------------
def _small_kernel(adj_ref, x_ref, w_ref, *rest, add_self, normalize,
                  use_bias, w_first):
    """Several whole (small) graphs per grid step."""
    if use_bias:
        b_ref, o_ref = rest
    else:
        b_ref, o_ref = None, rest[0]

    adj = adj_ref[...]                          # (Bt, Np, Np)  compute dtype
    x = x_ref[...]                              # (Bt, Np, Di)
    w = w_ref[...]                              # (Di, Do)
    bt, np_, di = x.shape
    do = w.shape[1]

    if w_first:
        # (adj @ x + x) @ W == adj @ (x@W) + (x@W); x@W done once per graph.
        xw = jnp.dot(x.reshape(bt * np_, di), w,
                     preferred_element_type=jnp.float32).reshape(bt, np_, do)
        y = jnp.einsum("bij,bjd->bid", adj, xw.astype(adj.dtype),
                       preferred_element_type=jnp.float32)
        if add_self:
            y = y + xw
    else:
        y = jnp.einsum("bij,bjd->bid", adj, x,
                       preferred_element_type=jnp.float32)
        if add_self:
            y = y + x.astype(jnp.float32)
        y = jnp.dot(y.reshape(bt * np_, di).astype(w.dtype), w,
                    preferred_element_type=jnp.float32).reshape(bt, np_, do)
    _epilogue(y, b_ref, o_ref, normalize)


def _tiled_kernel(adj_ref, x_ref, w_ref, *rest, add_self, normalize, use_bias):
    """Row-tiled large-N path (Di <= Do): y = (adj_tile @ x [+ x_rows]) @ W."""
    if use_bias:
        b_ref, o_ref = rest
    else:
        b_ref, o_ref = None, rest[0]

    tm = adj_ref.shape[0]
    w = w_ref[...]                                               # (Di, Do)
    y = jnp.dot(adj_ref[...], x_ref[...],
                preferred_element_type=jnp.float32)              # (TM, Di) f32
    if add_self:
        row0 = pl.multiple_of(pl.program_id(1) * tm, tm)         # tm | Np
        y = y + x_ref[pl.ds(row0, tm), :].astype(jnp.float32)
    y = jnp.dot(y.astype(w.dtype), w,
                preferred_element_type=jnp.float32)              # (TM, Do)
    _epilogue(y, b_ref, o_ref, normalize)


def _tiled_xw_kernel(adj_ref, xw_ref, *rest, add_self, normalize, use_bias):
    """Row-tiled large-N path (Do < Di): xw = x@W precomputed once (hoisted)."""
    if use_bias:
        b_ref, o_ref = rest
    else:
        b_ref, o_ref = None, rest[0]

    tm = adj_ref.shape[0]
    y = jnp.dot(adj_ref[...], xw_ref[...],
                preferred_element_type=jnp.float32)              # (TM, Do)
    if add_self:
        row0 = pl.multiple_of(pl.program_id(1) * tm, tm)         # tm | Np
        y = y + xw_ref[pl.ds(row0, tm), :].astype(jnp.float32)
    _epilogue(y, b_ref, o_ref, normalize)


# ---------------------------------------------------------------------------
# Wrapper
# ---------------------------------------------------------------------------
def graph_conv(x, adj, weight, bias=None, *, add_self=False,
               normalize_embedding=False, compute_dtype=jnp.bfloat16):
    """x: [B, N, D_in], adj: [B, N, N], weight: [D_in, D_out], bias: [D_out].

    compute_dtype: dtype streamed from HBM / fed to the MXU (accumulation is
    always f32).  Default bf16; pass jnp.float32 for full-precision adj/x.
    """
    B, N, D_in = x.shape
    D_out = weight.shape[1]
    use_bias = bias is not None
    out_dtype = x.dtype
    cd = jnp.dtype(compute_dtype)
    cd_size = cd.itemsize
    out_size = jnp.dtype(out_dtype).itemsize
    sub = _sublane_multiple(cd)

    # Lane-dense feature dims -> unmasked stores, full MXU passes.
    di = _round_up(D_in, 128)
    do = _round_up(D_out, 128)
    w_first = do < di                 # run the N^2 contraction over min(di,do)
    small = N <= 512
    # Node dim: sublane multiple for small graphs, 128 for the tiled path
    # (no longer rounded up to the row tile).
    np_ = _round_up(N, sub) if small else _round_up(N, 128)

    vmem_cap = _vmem_capacity_bytes()
    budget = int(vmem_cap * 0.6)

    # --- pad & cast (zero padding is inert through matmuls/bias/normalize) ---
    adj_c = adj.astype(cd)
    if np_ != N:
        adj_c = jnp.pad(adj_c, ((0, 0), (0, np_ - N), (0, np_ - N)))
    w_c = weight.astype(cd)
    if di != D_in or do != D_out:
        w_c = jnp.pad(w_c, ((0, di - D_in), (0, do - D_out)))
    bias2d = None
    if use_bias:
        bias2d = bias.astype(jnp.float32).reshape(1, D_out)
        if do != D_out:
            bias2d = jnp.pad(bias2d, ((0, 0), (0, do - D_out)))
    if small or not w_first:
        x_c = x.astype(cd)
        if np_ != N or di != D_in:
            x_c = jnp.pad(x_c, ((0, 0), (0, np_ - N), (0, di - D_in)))
    if (not small) and w_first:
        # Hoist x@W out of the row-tile loop: one matmul, stream only xw.
        xw = jnp.einsum("bnd,de->bne", x.astype(cd), weight.astype(cd),
                        preferred_element_type=jnp.float32).astype(cd)
        if np_ != N or do != D_out:
            xw = jnp.pad(xw, ((0, 0), (0, np_ - N), (0, do - D_out)))

    if small:
        # Batch several whole graphs per step, but keep >= 2 (ideally 4) grid
        # steps so both v7x TensorCores get work and pipelining survives.
        target_steps = min(B, 4)
        max_bt = max(1, B // target_steps)
        bt = 1
        for d in range(1, max_bt + 1):
            if B % d:
                continue
            need_d = (2 * d * np_ * (np_ + di) * cd_size
                      + 2 * d * np_ * do * out_size
                      + 3 * d * np_ * max(di, do) * 4)
            if need_d <= budget:
                bt = d
        grid = (B // bt,)
        in_specs = [
            pl.BlockSpec((bt, np_, np_), lambda g: (g, 0, 0)),   # adj slab
            pl.BlockSpec((bt, np_, di), lambda g: (g, 0, 0)),    # x slab
            pl.BlockSpec((di, do), lambda g: (0, 0)),            # weight
        ]
        args = [adj_c, x_c, w_c]
        if use_bias:
            in_specs.append(pl.BlockSpec((1, do), lambda g: (0, 0)))
            args.append(bias2d)
        out_spec = pl.BlockSpec((bt, np_, do), lambda g: (g, 0, 0))
        dim_sem = ("parallel",)
        kernel = functools.partial(_small_kernel, add_self=add_self,
                                   normalize=normalize_embedding,
                                   use_bias=use_bias, w_first=w_first)
        need = (2 * bt * np_ * (np_ + di) * cd_size
                + 2 * bt * np_ * do * out_size
                + 2 * di * do * cd_size
                + 3 * bt * np_ * max(di, do) * 4
                + 2 * 8 * do * 4)
    else:
        feat = xw if w_first else x_c            # resident per batch element
        feat_cols = do if w_first else di
        # Adaptive row tile: largest 128-multiple divisor of Np that fits the
        # generation's VMEM (double-buffered adj/out + resident feat/weight).
        resident = 2 * np_ * feat_cols * cd_size
        if not w_first:
            resident += 2 * di * do * cd_size
        per_row = (2 * np_ * cd_size + 2 * do * out_size
                   + 4 * (feat_cols + 2 * do))
        avail = max(budget - resident - (4 << 20), 0)
        tm = 128
        for cand in (1024, 896, 768, 640, 512, 384, 256):
            if cand <= np_ and np_ % cand == 0 and cand * per_row <= avail:
                tm = cand
                break
        grid = (B, np_ // tm)
        in_specs = [
            pl.BlockSpec((None, tm, np_), lambda b, m: (b, m, 0)),        # adj
            pl.BlockSpec((None, np_, feat_cols), lambda b, m: (b, 0, 0)),  # x|xw
        ]
        args = [adj_c, feat]
        if not w_first:
            in_specs.append(pl.BlockSpec((di, do), lambda b, m: (0, 0)))
            args.append(w_c)
        if use_bias:
            in_specs.append(pl.BlockSpec((1, do), lambda b, m: (0, 0)))
            args.append(bias2d)
        out_spec = pl.BlockSpec((None, tm, do), lambda b, m: (b, m, 0))
        dim_sem = ("parallel", "parallel")       # keep both v7x TCs busy
        kern_fn = _tiled_xw_kernel if w_first else _tiled_kernel
        kernel = functools.partial(kern_fn, add_self=add_self,
                                   normalize=normalize_embedding,
                                   use_bias=use_bias)
        need = resident + tm * per_row + 2 * 8 * do * 4

    # dtype-aware limit, capped at 75% of physical VMEM (96 MiB on 128-MiB
    # v5e/v6e, 48 MiB on 64-MiB v7x) instead of a hard 48 MiB clip.
    vmem_limit = int(min(max(need + (16 << 20), 32 << 20),
                         int(vmem_cap * 0.75)))

    out = pl.pallas_call(
        kernel,
        out_shape=jax.ShapeDtypeStruct((B, np_, do), out_dtype),
        grid_spec=pltpu.PrefetchScalarGridSpec(
            num_scalar_prefetch=0,
            grid=grid,
            in_specs=in_specs,
            out_specs=out_spec,
        ),
        compiler_params=pltpu.CompilerParams(
            dimension_semantics=dim_sem,
            vmem_limit_bytes=vmem_limit,
        ),
    )(*args)

    if np_ != N or do != D_out:
        out = out[:, :N, :D_out]
    return out


# ---------------------------------------------------------------------------
# Pure-JAX reference (mirrors the torch forward)
# ---------------------------------------------------------------------------
def graph_conv_ref(x, adj, weight, bias=None, *, add_self=False,
                   normalize_embedding=False):
    y = jnp.matmul(adj, x)
    if add_self:
        y = y + x
    y = jnp.matmul(y, weight)
    if bias is not None:
        y = y + bias
    if normalize_embedding:
        norm = jnp.sqrt(jnp.sum(y * y, axis=2, keepdims=True))
        y = y / jnp.maximum(norm, 1e-12)
    return y


# ---------------------------------------------------------------------------
# Demo / self-test
# ---------------------------------------------------------------------------
if __name__ == "__main__":
    def run_case(name, B, N, D_in, D_out, *, add_self, normalize, use_bias,
                 adj_scale, compute_dtype, atol, rtol, key):
        k1, k2, k3, k4 = jax.random.split(key, 4)
        x = jax.random.normal(k1, (B, N, D_in), dtype=jnp.float32)
        adj = jax.random.uniform(k2, (B, N, N), dtype=jnp.float32) * adj_scale
        w = jax.random.normal(k3, (D_in, D_out), dtype=jnp.float32) * 0.1
        b = (jax.random.normal(k4, (D_out,), dtype=jnp.float32) * 0.1
             if use_bias else None)

        out = graph_conv(x, adj, w, b, add_self=add_self,
                         normalize_embedding=normalize,
                         compute_dtype=compute_dtype)
        out = jax.block_until_ready(out)

        # Reference in f32; for bf16 compute, round the MXU operands the same
        # way so the comparison isolates kernel errors from input rounding.
        if jnp.dtype(compute_dtype) == jnp.dtype(jnp.bfloat16):
            xr = x.astype(jnp.bfloat16).astype(jnp.float32)
            ar = adj.astype(jnp.bfloat16).astype(jnp.float32)
            wr = w.astype(jnp.bfloat16).astype(jnp.float32)
        else:
            xr, ar, wr = x, adj, w
        ref = graph_conv_ref(xr, ar, wr, b, add_self=add_self,
                             normalize_embedding=normalize)
        assert out.shape == (B, N, D_out), f"{name}: bad shape {out.shape}"
        assert jnp.allclose(out, ref, atol=atol, rtol=rtol), (
            f"{name}: mismatch vs reference "
            f"(max abs err {jnp.max(jnp.abs(out - ref)):.3e})")

    keys = jax.random.split(jax.random.PRNGKey(0), 8)

    # 1) module demo shapes, small batched path, defaults (bf16 MXU operands)
    run_case("small", B=2, N=16, D_in=32, D_out=64, add_self=False,
             normalize=False, use_bias=True, adj_scale=1.0,
             compute_dtype=jnp.bfloat16, atol=5e-2, rtol=2e-2, key=keys[0])
    # 2) small path, full f32 precision, add_self + normalize, no bias
    run_case("small_f32_flags", B=2, N=16, D_in=32, D_out=64, add_self=True,
             normalize=True, use_bias=False, adj_scale=1.0,
             compute_dtype=jnp.float32, atol=2e-3, rtol=2e-3, key=keys[1])
    # 3) small path, x@W-first ordering (padded D_out < padded D_in)
    run_case("small_w_first", B=2, N=24, D_in=300, D_out=64, add_self=False,
             normalize=False, use_bias=True, adj_scale=1.0,
             compute_dtype=jnp.bfloat16, atol=5e-2, rtol=2e-2, key=keys[2])
    # 4) row-tiled large-N path, full f32, tight check vs reference
    run_case("tiled_f32", B=2, N=600, D_in=32, D_out=64, add_self=False,
             normalize=False, use_bias=True, adj_scale=1.0,
             compute_dtype=jnp.float32, atol=2e-3, rtol=2e-3, key=keys[3])
    # 5) row-tiled large-N path with hoisted x@W (w_first), all flags, bf16
    run_case("tiled_w_first", B=2, N=600, D_in=300, D_out=64, add_self=True,
             normalize=True, use_bias=True, adj_scale=1.0 / 600.0,
             compute_dtype=jnp.bfloat16, atol=5e-2, rtol=2e-2, key=keys[4])

    print("KERNEL_OK")
</pallas_src>

<mosaic_0001>
module attributes {stable_mosaic.version = 11 : i64} {
  func.func @_small_kernel(%arg0: i32, %arg1: memref<1x16x16xbf16, #tpu.memory_space<vmem>>, %arg2: memref<1x16x128xbf16, #tpu.memory_space<vmem>>, %arg3: memref<128x128xbf16, #tpu.memory_space<vmem>>, %arg4: memref<1x128xf32, #tpu.memory_space<vmem>>, %arg5: memref<1x16x128xf32, #tpu.memory_space<vmem>>) attributes {dimension_semantics = [#tpu.dimension_semantics<parallel>], iteration_bounds = array<i64: 2>, scalar_prefetch = 0 : i64, scratch_operands = 0 : i64, tpu.core_type = #tpu.core_type<tc>, window_params = [{transform_indices = @transform_0, window_bounds = array<i64: 1, 16, 16>}, {transform_indices = @transform_1, window_bounds = array<i64: 1, 16, 128>}, {pipeline_mode = #tpu.pipeline_mode<synchronous>, transform_indices = @transform_2, window_bounds = array<i64: 128, 128>}, {pipeline_mode = #tpu.pipeline_mode<synchronous>, transform_indices = @transform_3, window_bounds = array<i64: 1, 128>}, {transform_indices = @transform_4, window_bounds = array<i64: 1, 16, 128>}]} {
    %c0 = arith.constant 0 : index
    %c0_0 = arith.constant 0 : index
    %c0_1 = arith.constant 0 : index
    %0 = vector.load %arg1[%c0, %c0_0, %c0_1] : memref<1x16x16xbf16, #tpu.memory_space<vmem>>, vector<1x16x16xbf16>
    %c0_2 = arith.constant 0 : index
    %c0_3 = arith.constant 0 : index
    %c0_4 = arith.constant 0 : index
    %1 = vector.load %arg2[%c0_2, %c0_3, %c0_4] : memref<1x16x128xbf16, #tpu.memory_space<vmem>>, vector<1x16x128xbf16>
    %c0_5 = arith.constant 0 : index
    %c0_6 = arith.constant 0 : index
    %2 = vector.load %arg3[%c0_5, %c0_6] : memref<128x128xbf16, #tpu.memory_space<vmem>>, vector<128x128xbf16>
    "tpu.trace_start"() <{level = 10 : i32, message = "bij,bjd->bid"}> : () -> ()
    %cst = arith.constant dense<0.000000e+00> : vector<1x16x128xf32>
    %3 = tpu.matmul %0, %1, %cst {dimension_numbers = #tpu.dot_dimension_numbers<[2], [1], [1], [2], [0, 0, 0, 1, 1, 2], [0], [0]>} : vector<1x16x16xbf16>, vector<1x16x128xbf16>, vector<1x16x128xf32> -> vector<1x16x128xf32>
    "tpu.trace_stop"() : () -> ()
    %4 = vector.shape_cast %3 : vector<1x16x128xf32> to vector<16x128xf32>
    %5 = arith.truncf %4 : vector<16x128xf32> to vector<16x128xbf16>
    %cst_7 = arith.constant dense<0.000000e+00> : vector<16x128xf32>
    %6 = tpu.matmul %5, %2, %cst_7 {dimension_numbers = #tpu.dot_dimension_numbers<[1], [0], [0], [1], [0, 0, 1, 1], [], []>} : vector<16x128xbf16>, vector<128x128xbf16>, vector<16x128xf32> -> vector<16x128xf32>
    %7 = vector.shape_cast %6 : vector<16x128xf32> to vector<1x16x128xf32>
    %c0_8 = arith.constant 0 : index
    %c0_9 = arith.constant 0 : index
    %8 = vector.load %arg4[%c0_8, %c0_9] : memref<1x128xf32, #tpu.memory_space<vmem>>, vector<1x128xf32>
    %9 = vector.shape_cast %8 : vector<1x128xf32> to vector<1x1x128xf32>
    %10 = vector.broadcast %9 : vector<1x1x128xf32> to vector<1x16x128xf32>
    %11 = arith.addf %7, %10 : vector<1x16x128xf32>
    %c0_10 = arith.constant 0 : index
    %c0_11 = arith.constant 0 : index
    %c0_12 = arith.constant 0 : index
    %12 = vector.load %arg5[%c0_10, %c0_11, %c0_12] : memref<1x16x128xf32, #tpu.memory_space<vmem>>, vector<1x16x128xf32>
    tpu.vector_store %arg5[%c0_10, %c0_11, %c0_12], %11 {strides = array<i32>} : memref<1x16x128xf32, #tpu.memory_space<vmem>>, vector<1x16x128xf32>,
    return
  }
  func.func @transform_0(%arg0: i32) -> (i32, i32, i32) {
    %c0_i32 = arith.constant 0 : i32
    %c0_i32_0 = arith.constant 0 : i32
    %c0_i32_1 = arith.constant 0 : i32
    return %arg0, %c0_i32, %c0_i32_0 : i32, i32, i32
  }
  func.func @transform_1(%arg0: i32) -> (i32, i32, i32) {
    %c0_i32 = arith.constant 0 : i32
    %c0_i32_0 = arith.constant 0 : i32
    %c0_i32_1 = arith.constant 0 : i32
    return %arg0, %c0_i32, %c0_i32_0 : i32, i32, i32
  }
  func.func @transform_2(%arg0: i32) -> (i32, i32) {
    %c0_i32 = arith.constant 0 : i32
    %c0_i32_0 = arith.constant 0 : i32
    %c0_i32_1 = arith.constant 0 : i32
    return %c0_i32, %c0_i32_0 : i32, i32
  }
  func.func @transform_3(%arg0: i32) -> (i32, i32) {
    %c0_i32 = arith.constant 0 : i32
    %c0_i32_0 = arith.constant 0 : i32
    %c0_i32_1 = arith.constant 0 : i32
    return %c0_i32, %c0_i32_0 : i32, i32
  }
  func.func @transform_4(%arg0: i32) -> (i32, i32, i32) {
    %c0_i32 = arith.constant 0 : i32
    %c0_i32_0 = arith.constant 0 : i32
    %c0_i32_1 = arith.constant 0 : i32
    return %arg0, %c0_i32, %c0_i32_0 : i32, i32, i32
  }
}

</mosaic_0001>

<llo_original>
// kernel: tpu_custom_call.1
$region0: #{tpu_custom_call.1}
  #allocation0 [shape = 'u32[]', space=smem, size = 0x4, offset = 0x4, fixed_abs, tag = 'smem constant byte address 0x4 - core index']
  #allocation1 [shape = 'u32[144,128]{1,0:T(1,128)}', space=vmem, size = 0x12000, scoped, tag = 'internal scratch']
  %s0 = inlined_call_operand.hbm [shape: bf16[2,16,16], index: 0, kind: input, shape index: {}]
  %s1 = inlined_call_operand.hbm [shape: bf16[2,16,128], index: 1, kind: input, shape index: {}]
  %s2 = inlined_call_operand.hbm [shape: bf16[128,128], index: 2, kind: input, shape index: {}]
  %s3 = inlined_call_operand.vmem [shape: f32[1,128], index: 3, kind: input, shape index: {}]
  %s4 = inlined_call_operand.hbm [shape: f32[2,16,128], index: 4, kind: output, shape index: {}]
  %s5 = sld [smem:[#allocation0]]
  $region61: #{tpu_custom_call.1} parent=0
    _
  %s7 = ssub.s32 1, %s5
  %s8 = scalar_select 0, %s7, %s5
  $region1: #{tpu_custom_call.1} parent=0
    #allocation2 [shape = 'u8[8192]{0}', space=vmem, size = 0x2000, scoped, tag = 'input window, operand 0']
    #allocation3 [shape = 's32[2]{0}', space=sflag, size = 0x8, scoped, tag = 'scoped memory for tpu_custom_call.1']
    #allocation4 [shape = 's32[2]{0}', space=sflag, size = 0x8, scoped, tag = 'scoped memory for tpu_custom_call.1']
    #allocation5 [shape = 'u8[8192]{0}', space=vmem, size = 0x2000, scoped, tag = 'input window, operand 1']
    #allocation6 [shape = 's32[2]{0}', space=sflag, size = 0x8, scoped, tag = 'scoped memory for tpu_custom_call.1']
    #allocation7 [shape = 'u8[32768]{0}', space=vmem, size = 0x8000, scoped, tag = 'input window, operand 2, single buffered']
    #allocation8 [shape = 'u8[16384]{0}', space=vmem, size = 0x4000, scoped, tag = 'output window, operand 0']
    %9 = vsyncpa [#allocation3], 0
    %s10 = scalar_lea.sflag [#allocation3], 1
    %11 = vsyncpa %s10, 0
    %12 = vsyncpa [#allocation6], 0
    %s13 = scalar_lea.sflag [#allocation6], 1
    %14 = vsyncpa %s13, 0
    %15 = vsyncpa [#allocation4], 0
    %s16 = scalar_lea.sflag [#allocation4], 1
    %17 = vsyncpa %s16, 0
    loop: start=0, step=1, limit=4
    $region2: #{tpu_custom_call.1} parent=1 // loop_pre_header
      _
    $region3: #{tpu_custom_call.1} parent=1 // loop_header
      %s19 = sphi 0, %s23
      %p20 = scmp.ge.s32.totalorder %s19, 4
      %s29 = sphi 0, %s31
      %s32 = sphi 0, %s29
      %s33 = sphi 0, %s32
      %s49 = sphi 0, %s33
      %s55 = sphi 0, %s57
      %s58 = sphi 0, %s55
      %s59 = sphi 0, %s58
      %s75 = sphi 0, %s59
      %s79 = sphi 0, %s79
      %s81 = sphi 0, %s79
      %s82 = sphi 0, %s81
      %s96 = sphi 0, %s82
      %s100 = sphi 0, %s100
      %s102 = sphi 0, %s100
      %s103 = sphi 0, %s102
      %s117 = sphi 0, %s103
      %s123 = sphi 0, %s125
      %s126 = sphi 0, %s123
      %s127 = sphi 0, %s126
      %s143 = sphi 0, %s127
    $region4: #{tpu_custom_call.1} parent=1 // loop_header_branch
      %22 = sbr.rel (%p20) target = $region8
    $region5: #{tpu_custom_call.1} parent=1 // loop_body
      %s24 = ssub.s32 %s19, 1
      %s25 = ssub.s32 %s19, 2
      %s26 = sadd.s32 %s19, 1
      %s27 = ssub.s32 %s19, %s26
      %p28 = scmp.eq.s32.totalorder %s27, 0
      %s30 = sadd.s32 %s29, 1
      %s31 = scalar_select %p28, %s29, %s30
      %p34 = pneg %p28
      %p35 = scmp.eq.s32.totalorder %s19, 1
      %p36 = por %p34, %p35
      %p37 = scmp.ne.s32.totalorder %s29, %s32
      %p38 = scmp.eq.s32.totalorder %s19, 0
      %p39 = por %p37, %p38
      %p40 = scmp.ne.s32.totalorder %s29, %s32
      %p41 = scmp.eq.s32.totalorder %s24, 1
      %p42 = por %p40, %p41
      %p43 = scmp.ne.s32.totalorder %s32, %s33
      %p44 = scmp.eq.s32.totalorder %s24, 0
      %p45 = por %p43, %p44
      %p46 = scmp.ne.s32.totalorder %s32, %s33
      %p47 = scmp.eq.s32.totalorder %s25, 1
      %p48 = por %p46, %p47
      %p50 = scmp.ne.s32.totalorder %s33, %s49
      %p51 = scmp.eq.s32.totalorder %s25, 0
      %p52 = por %p50, %p51
      %s53 = ssub.s32 %s19, %s26
      %p54 = scmp.eq.s32.totalorder %s53, 0
      %s56 = sadd.s32 %s55, 1
      %s57 = scalar_select %p54, %s55, %s56
      %p60 = pneg %p54
      %p61 = scmp.eq.s32.totalorder %s19, 1
      %p62 = por %p60, %p61
      %p63 = scmp.ne.s32.totalorder %s55, %s58
      %p64 = scmp.eq.s32.totalorder %s19, 0
      %p65 = por %p63, %p64
      %p66 = scmp.ne.s32.totalorder %s55, %s58
      %p67 = scmp.eq.s32.totalorder %s24, 1
      %p68 = por %p66, %p67
      %p69 = scmp.ne.s32.totalorder %s58, %s59
      %p70 = scmp.eq.s32.totalorder %s24, 0
      %p71 = por %p69, %p70
      %p72 = scmp.ne.s32.totalorder %s58, %s59
      %p73 = scmp.eq.s32.totalorder %s25, 1
      %p74 = por %p72, %p73
      %p76 = scmp.ne.s32.totalorder %s59, %s75
      %p77 = scmp.eq.s32.totalorder %s25, 0
      %p78 = por %p76, %p77
      %s80 = sadd.s32 %s79, 1
      %p83 = scmp.eq.s32.totalorder %s19, 1
      %p84 = scmp.ne.s32.totalorder %s79, %s81
      %p85 = scmp.eq.s32.totalorder %s19, 0
      %p86 = por %p84, %p85
      %p87 = scmp.ne.s32.totalorder %s79, %s81
      %p88 = scmp.eq.s32.totalorder %s24, 1
      %p89 = por %p87, %p88
      %p90 = scmp.ne.s32.totalorder %s81, %s82
      %p91 = scmp.eq.s32.totalorder %s24, 0
      %p92 = por %p90, %p91
      %p93 = scmp.ne.s32.totalorder %s81, %s82
      %p94 = scmp.eq.s32.totalorder %s25, 1
      %p95 = por %p93, %p94
      %p97 = scmp.ne.s32.totalorder %s82, %s96
      %p98 = scmp.eq.s32.totalorder %s25, 0
      %p99 = por %p97, %p98
      %s101 = sadd.s32 %s100, 1
      %p104 = scmp.eq.s32.totalorder %s19, 1
      %p105 = scmp.ne.s32.totalorder %s100, %s102
      %p106 = scmp.eq.s32.totalorder %s19, 0
      %p107 = por %p105, %p106
      %p108 = scmp.ne.s32.totalorder %s100, %s102
      %p109 = scmp.eq.s32.totalorder %s24, 1
      %p110 = por %p108, %p109
      %p111 = scmp.ne.s32.totalorder %s102, %s103
      %p112 = scmp.eq.s32.totalorder %s24, 0
      %p113 = por %p111, %p112
      %p114 = scmp.ne.s32.totalorder %s102, %s103
      %p115 = scmp.eq.s32.totalorder %s25, 1
      %p116 = por %p114, %p115
      %p118 = scmp.ne.s32.totalorder %s103, %s117
      %p119 = scmp.eq.s32.totalorder %s25, 0
      %p120 = por %p118, %p119
      %s121 = ssub.s32 %s19, %s26
      %p122 = scmp.eq.s32.totalorder %s121, 0
      %s124 = sadd.s32 %s123, 1
      %s125 = scalar_select %p122, %s123, %s124
      %p128 = pneg %p122
      %p129 = scmp.eq.s32.totalorder %s19, 1
      %p130 = por %p128, %p129
      %p131 = scmp.ne.s32.totalorder %s123, %s126
      %p132 = scmp.eq.s32.totalorder %s19, 0
      %p133 = por %p131, %p132
      %p134 = scmp.ne.s32.totalorder %s123, %s126
      %p135 = scmp.eq.s32.totalorder %s24, 1
      %p136 = por %p134, %p135
      %p137 = scmp.ne.s32.totalorder %s126, %s127
      %p138 = scmp.eq.s32.totalorder %s24, 0
      %p139 = por %p137, %p138
      %p140 = scmp.ne.s32.totalorder %s126, %s127
      %p141 = scmp.eq.s32.totalorder %s25, 1
      %p142 = por %p140, %p141
      %p144 = scmp.ne.s32.totalorder %s127, %s143
      %p145 = scmp.eq.s32.totalorder %s25, 0
      %p146 = por %p144, %p145
      %p147 = scmp.le.s32.totalorder 1, %s19
      %p148 = scmp.lt.s32.totalorder %s19, 3
      %p149 = pnand %p147, %p148
      %p150 = pneg %p149
      // Predicated region
      $region9: #{tpu_custom_call.1} parent=5 // pred_check
        _
      $region10: #{tpu_custom_call.1} parent=5 // pred_check_branch
        %152 = sbr.rel (%p149) target = $region12
      $region11: #{tpu_custom_call.1} parent=5 // pred_region
        %s153 = ssub.s32 %s19, 1
        // Predicated region
        $region13: #{tpu_custom_call.1} parent=11 // pred_check
          %p154 = pneg %p92
        $region14: #{tpu_custom_call.1} parent=11 // pred_check_branch
          %156 = sbr.rel (%p154) target = $region16
        $region15: #{tpu_custom_call.1} parent=11 // pred_region
          %s158 = ssub.s32 1024, 1024
          %159 = vsyncadd [#allocation6], %s158
          %s160 = sshll.u32 [#allocation7], 4
          %s161 = int_to_ptr.vmem [resolvable:$true] %s160
          %166 = dma.hbm_to_vmem [thread:$0]  %s2, 1024, %s161, [#allocation6], 64, 64, 4
        $region16: #{tpu_custom_call.1} parent=11 // pred_fallthru
          _
        // Predicated region
        $region17: #{tpu_custom_call.1} parent=11 // pred_check
          %p167 = pneg %p113
        $region18: #{tpu_custom_call.1} parent=11 // pred_check_branch
          %169 = sbr.rel (%p167) target = $region20
        $region19: #{tpu_custom_call.1} parent=11 // pred_region
          _
        $region20: #{tpu_custom_call.1} parent=11 // pred_fallthru
          _
      $region12: #{tpu_custom_call.1} parent=5 // pred_fallthru
        _
      %p170 = scmp.lt.s32.totalorder %s19, 2
      // Predicated region
      $region21: #{tpu_custom_call.1} parent=5 // pred_check
        %p171 = pneg %p170
      $region22: #{tpu_custom_call.1} parent=5 // pred_check_branch
        %173 = sbr.rel (%p171) target = $region24
      $region23: #{tpu_custom_call.1} parent=5 // pred_region
        // Predicated region
        $region25: #{tpu_custom_call.1} parent=23 // pred_check
          %p174 = pneg %p39
        $region26: #{tpu_custom_call.1} parent=23 // pred_check_branch
          %176 = sbr.rel (%p174) target = $region28
        $region27: #{tpu_custom_call.1} parent=23 // pred_region
          %s177 = sand.u32 %s29, 1
          %s178 = scalar_lea.sflag [#allocation3], %s177
          %s179 = sand.u32 %s29, 1
          %s180 = smul.addr %s179, 8
          %s181 = scalar_lea.vmem [#allocation2], %s180
          %s183 = ssub.s32 128, 128
          %184 = vsyncadd %s178, %s183
          %s185 = smul.addr %s19, 2
          %s186 = smul.addr %s185, 64
          %s187 = scalar_lea.hbm %s0, %s186
          %s188 = sshll.u32 %s181, 4
          %s189 = int_to_ptr.vmem [resolvable:$true] %s188
          %194 = dma.hbm_to_vmem [thread:$0]  %s187, 128, %s189, %s178, 64, 64, 4
        $region28: #{tpu_custom_call.1} parent=23 // pred_fallthru
          _
        // Predicated region
        $region29: #{tpu_custom_call.1} parent=23 // pred_check
          %p195 = pneg %p65
        $region30: #{tpu_custom_call.1} parent=23 // pred_check_branch
          %197 = sbr.rel (%p195) target = $region32
        $region31: #{tpu_custom_call.1} parent=23 // pred_region
          %s198 = sand.u32 %s19, 1
          %s199 = scalar_lea.sflag [#allocation6], %s198
          %s200 = sand.u32 %s55, 1
          %s201 = smul.addr %s200, 8
          %s202 = scalar_lea.vmem [#allocation5], %s201
          %s204 = ssub.s32 128, 128
          %205 = vsyncadd %s199, %s204
          %s206 = smul.addr %s19, 2
          %s207 = smul.addr %s206, 64
          %s208 = scalar_lea.hbm %s1, %s207
          %s209 = sshll.u32 %s202, 4
          %s210 = int_to_ptr.vmem [resolvable:$true] %s209
          %215 = dma.hbm_to_vmem [thread:$0]  %s208, 128, %s210, %s199, 64, 64, 4
        $region32: #{tpu_custom_call.1} parent=23 // pred_fallthru
          _
      $region24: #{tpu_custom_call.1} parent=5 // pred_fallthru
        _
      %p216 = scmp.le.s32.totalorder 1, %s19
      %p217 = scmp.lt.s32.totalorder %s19, 3
      %p218 = pnand %p216, %p217
      %p219 = pneg %p218
      // Predicated region
      $region33: #{tpu_custom_call.1} parent=5 // pred_check
        _
      $region34: #{tpu_custom_call.1} parent=5 // pred_check_branch
        %221 = sbr.rel (%p218) target = $region36
      $region35: #{tpu_custom_call.1} parent=5 // pred_region
        %s222 = ssub.s32 %s19, 1
        %s223 = sand.u32 %s32, 1
        %s224 = scalar_lea.sflag [#allocation3], %s223
        %s225 = sand.u32 %s32, 1
        %s226 = smul.addr %s225, 8
        %s227 = scalar_lea.vmem [#allocation2], %s226
        // Predicated region
        $region37: #{tpu_custom_call.1} parent=35 // pred_check
          %p228 = pneg %p45
        $region38: #{tpu_custom_call.1} parent=35 // pred_check_branch
          %230 = sbr.rel (%p228) target = $region40
        $region39: #{tpu_custom_call.1} parent=35 // pred_region
          %231 = dma.done %s224, 128
        $region40: #{tpu_custom_call.1} parent=35 // pred_fallthru
          _
        %s232 = sand.u32 %s24, 1
        %s233 = scalar_lea.sflag [#allocation6], %s232
        %s234 = sand.u32 %s58, 1
        %s235 = smul.addr %s234, 8
        %s236 = scalar_lea.vmem [#allocation5], %s235
        // Predicated region
        $region41: #{tpu_custom_call.1} parent=35 // pred_check
          %p237 = pneg %p71
        $region42: #{tpu_custom_call.1} parent=35 // pred_check_branch
          %239 = sbr.rel (%p237) target = $region44
        $region43: #{tpu_custom_call.1} parent=35 // pred_region
          %240 = dma.done %s233, 128
        $region44: #{tpu_custom_call.1} parent=35 // pred_fallthru
          _
        // Predicated region
        $region45: #{tpu_custom_call.1} parent=35 // pred_check
          %p241 = pneg %p92
        $region46: #{tpu_custom_call.1} parent=35 // pred_check_branch
          %243 = sbr.rel (%p241) target = $region48
        $region47: #{tpu_custom_call.1} parent=35 // pred_region
          %244 = dma.done [#allocation6], 1024
        $region48: #{tpu_custom_call.1} parent=35 // pred_fallthru
          _
        %s245 = sand.u32 %s32, 1
        %s246 = scalar_lea.sflag [#allocation3], %s245
        %s247 = sand.u32 %s32, 1
        %s248 = smul.addr %s247, 8
        %s249 = scalar_lea.vmem [#allocation2], %s248
        %p250 = pneg %p45
        %p251 = pneg %p42
        %s252 = sand.u32 %s24, 1
        %s253 = scalar_lea.sflag [#allocation6], %s252
        %s254 = sand.u32 %s58, 1
        %s255 = smul.addr %s254, 8
        %s256 = scalar_lea.vmem [#allocation5], %s255
        %p257 = pneg %p71
        %p258 = pneg %p68
        %p259 = pneg %p92
        %p260 = pneg %p89
        %p261 = pneg %p113
        %p262 = pneg %p110
        %p263 = pneg %p139
        %p264 = pneg %p136
        %s265 = sand.u32 %s126, 1
        %s266 = scalar_lea.sflag [#allocation4], %s265
        %s267 = sand.u32 %s126, 1
        %s268 = smul.addr %s267, 16
        %s269 = scalar_lea.vmem [#allocation8], %s268
        %v271 = vld [vmem:[%s227] sm:$0xf]
        %v272 = vld [vmem:[%s227 + $0x4] sm:$0xf]
        %v273 = vld [vmem:[%s236] sm:$0xf]
        %v274 = vld [vmem:[%s236 + $0x4] sm:$0xf]
        %v275 = vld [vmem:[#allocation7] sm:$0xf]
        %v276 = vld [vmem:[#allocation7 + $0x4] sm:$0xf]
        %v277 = vld [vmem:[#allocation7 + $0x8] sm:$0xf]
        %v278 = vld [vmem:[#allocation7 + $0xc] sm:$0xf]
        %v279 = vld [vmem:[#allocation7 + $0x10] sm:$0xf]
        %v280 = vld [vmem:[#allocation7 + $0x14] sm:$0xf]
        %v281 = vld [vmem:[#allocation7 + $0x18] sm:$0xf]
        %v282 = vld [vmem:[#allocation7 + $0x1c] sm:$0xf]
        %v283 = vld [vmem:[#allocation7 + $0x20] sm:$0xf]
        %v284 = vld [vmem:[#allocation7 + $0x24] sm:$0xf]
        %v285 = vld [vmem:[#allocation7 + $0x28] sm:$0xf]
        %v286 = vld [vmem:[#allocation7 + $0x2c] sm:$0xf]
        %v287 = vld [vmem:[#allocation7 + $0x30] sm:$0xf]
        %v288 = vld [vmem:[#allocation7 + $0x34] sm:$0xf]
        %v289 = vld [vmem:[#allocation7 + $0x38] sm:$0xf]
        %v290 = vld [vmem:[#allocation7 + $0x3c] sm:$0xf]
        %v293 = vunpack.c.l.b16 %v271
        %v294 = vunpack.c.l.b16 %v272
        %v295 = vpack.c.b16 %v294, %v293
        %v298 = vunpack.c.l.b16 %v273
        %v299 = vunpack.c.l.b16 %v274
        %v300 = vpack.c.b16 %v299, %v298
        %vm302 = vcmask 130048
        %v304 = vsel %vm302, %v295, 0
        %306 = vmatprep.subr.bf16.mxu0 0
        %307 = vmatpush1.bf16.msra.mxu0 %v300
        %308 = vmatprep.subr.bf16.mxu0 0
        %309 = vmatpush1.bf16.msra.mxu0 0
        %310 = vmatprep.subr.bf16.mxu0 0
        %311 = vmatpush1.bf16.msra.mxu0 0
        %312 = vmatprep.subr.bf16.mxu0 0
        %313 = vmatpush1.bf16.msra.mxu0 0
        %314 = vmatprep.subr.bf16.mxu0 0
        %315 = vmatpush1.bf16.msra.mxu0 0
        %316 = vmatprep.subr.bf16.mxu0 0
        %317 = vmatpush1.bf16.msra.mxu0 0
        %318 = vmatprep.subr.bf16.mxu0 0
        %319 = vmatpush1.bf16.msra.mxu0 0
        %320 = vmatprep.subr.bf16.mxu0 0
        %321 = vmatpush1.bf16.msra.mxu0 0
        %322 = vmatprep.subr.bf16.mxu0 0
        %323 = vmatpush1.bf16.msra.mxu0 0
        %324 = vmatprep.subr.bf16.mxu0 0
        %325 = vmatpush1.bf16.msra.mxu0 0
        %326 = vmatprep.subr.bf16.mxu0 0
        %327 = vmatpush1.bf16.msra.mxu0 0
        %328 = vmatprep.subr.bf16.mxu0 0
        %329 = vmatpush1.bf16.msra.mxu0 0
        %330 = vmatprep.subr.bf16.mxu0 0
        %331 = vmatpush1.bf16.msra.mxu0 0
        %332 = vmatprep.subr.bf16.mxu0 0
        %333 = vmatpush1.bf16.msra.mxu0 0
        %334 = vmatprep.subr.bf16.mxu0 0
        %335 = vmatpush1.bf16.msra.mxu0 0
        %336 = vmatprep.subr.bf16.mxu0 0
        %337 = vmatpush1.bf16.msra.mxu0 0
        %338 = vmatprep.mubr.bf16.mxu0 0
        %339 = vmatmul.mubr.bf16.gmra.mrb[0].mxu0 %v304
        %v340 = vpop.f32.mrb[0].mxu0
        %v341 = vadd.f32 0.0, %v340
        %v342 = vpop.f32.mrb[0].mxu0
        %v343 = vpop.f32.mrb[0].mxu0
        %v344 = vadd.f32 0.0, %v343
        %v345 = vpop.f32.mrb[0].mxu0
        %346 = vdwg.mxu0
        %v347 = vpack.c.bf16 %v344, %v341
        %v364 = vunpack.c.l.b16 %v275
        %v365 = vunpack.c.l.b16 %v276
        %v366 = vunpack.c.l.b16 %v277
        %v367 = vunpack.c.l.b16 %v278
        %v368 = vunpack.c.l.b16 %v279
        %v369 = vunpack.c.l.b16 %v280
        %v370 = vunpack.c.l.b16 %v281
        %v371 = vunpack.c.l.b16 %v282
        %v372 = vunpack.c.l.b16 %v283
        %v373 = vunpack.c.l.b16 %v284
        %v374 = vunpack.c.l.b16 %v285
        %v375 = vunpack.c.l.b16 %v286
        %v376 = vunpack.c.l.b16 %v287
        %v377 = vunpack.c.l.b16 %v288
        %v378 = vunpack.c.l.b16 %v289
        %v379 = vunpack.c.l.b16 %v290
        %v380 = vpack.c.b16 %v365, %v364
        %v381 = vpack.c.b16 %v367, %v366
        %v382 = vpack.c.b16 %v369, %v368
        %v383 = vpack.c.b16 %v371, %v370
        %v384 = vpack.c.b16 %v373, %v372
        %v385 = vpack.c.b16 %v375, %v374
        %v386 = vpack.c.b16 %v377, %v376
        %v387 = vpack.c.b16 %v379, %v378
        %396 = vmatprep.subr.bf16.mxu0 0
        %397 = vmatpush1.bf16.msra.mxu0 %v380
        %398 = vmatprep.subr.bf16.mxu0 0
        %399 = vmatpush1.bf16.msra.mxu0 %v381
        %400 = vmatprep.subr.bf16.mxu0 0
        %401 = vmatpush1.bf16.msra.mxu0 %v382
        %402 = vmatprep.subr.bf16.mxu0 0
        %403 = vmatpush1.bf16.msra.mxu0 %v383
        %404 = vmatprep.subr.bf16.mxu0 0
        %405 = vmatpush1.bf16.msra.mxu0 %v384
        %406 = vmatprep.subr.bf16.mxu0 0
        %407 = vmatpush1.bf16.msra.mxu0 %v385
        %408 = vmatprep.subr.bf16.mxu0 0
        %409 = vmatpush1.bf16.msra.mxu0 %v386
        %410 = vmatprep.subr.bf16.mxu0 0
        %411 = vmatpush1.bf16.msra.mxu0 %v387
        %412 = vmatprep.subr.bf16.mxu0 0
        %413 = vmatpush1.bf16.msra.mxu0 0
        %414 = vmatprep.subr.bf16.mxu0 0
        %415 = vmatpush1.bf16.msra.mxu0 0
        %416 = vmatprep.subr.bf16.mxu0 0
        %417 = vmatpush1.bf16.msra.mxu0 0
        %418 = vmatprep.subr.bf16.mxu0 0
        %419 = vmatpush1.bf16.msra.mxu0 0
        %420 = vmatprep.subr.bf16.mxu0 0
        %421 = vmatpush1.bf16.msra.mxu0 0
        %422 = vmatprep.subr.bf16.mxu0 0
        %423 = vmatpush1.bf16.msra.mxu0 0
        %424 = vmatprep.subr.bf16.mxu0 0
        %425 = vmatpush1.bf16.msra.mxu0 0
        %426 = vmatprep.subr.bf16.mxu0 0
        %427 = vmatpush1.bf16.msra.mxu0 0
        %428 = vmatprep.mubr.bf16.mxu0 0
        %429 = vmatmul.mubr.bf16.gmra.mrb[0].mxu0 %v347
        %v430 = vpop.f32.mrb[0].mxu0
        %v431 = vadd.f32 0.0, %v430
        %v432 = vpop.f32.mrb[0].mxu0
        %v433 = vpop.f32.mrb[0].mxu0
        %v434 = vadd.f32 0.0, %v433
        %v435 = vpop.f32.mrb[0].mxu0
        %436 = vdwg.mxu0
        %v437 = vld [vmem:[%s3] sm:$0x1]
        %v439 = vlaneseq
        %v440 = vshrl.u32 %v439, 7
        %v441 = vsub.s32 0, %v440
        %v442 = vrot.slane %v437, %v441
        %v444 = vadd.f32 %v431, %v442
        %v445 = vadd.f32 %v434, %v442
        %446 = vst [vmem:[%s269] sm:$0xff] %v444
        %447 = vst [vmem:[%s269 + $0x8] sm:$0xff] %v445
        %s448 = sand.u32 %s126, 1
        %s449 = scalar_lea.sflag [#allocation4], %s448
        %s450 = sand.u32 %s126, 1
        %s451 = smul.addr %s450, 16
        %s452 = scalar_lea.vmem [#allocation8], %s451
        // Predicated region
        $region49: #{tpu_custom_call.1} parent=35 // pred_check
          %p453 = pneg %p136
        $region50: #{tpu_custom_call.1} parent=35 // pred_check_branch
          %455 = sbr.rel (%p453) target = $region52
        $region51: #{tpu_custom_call.1} parent=35 // pred_region
          %s457 = ssub.s32 256, 256
          %458 = vsyncadd %s449, %s457
          %s459 = smul.addr %s24, 2
          %s460 = smul.addr %s459, 128
          %s461 = scalar_lea.hbm %s4, %s460
          %s462 = sshll.u32 %s452, 4
          %s463 = int_to_ptr.vmem [resolvable:$true] %s462
          %468 = dma.vmem_to_hbm [thread:$0]  %s463, 256, %s461, %s449, 128, 128, 8
        $region52: #{tpu_custom_call.1} parent=35 // pred_fallthru
          _
      $region36: #{tpu_custom_call.1} parent=5 // pred_fallthru
        _
      %p469 = scmp.le.s32.totalorder 2, %s19
      // Predicated region
      $region53: #{tpu_custom_call.1} parent=5 // pred_check
        %p470 = pneg %p469
      $region54: #{tpu_custom_call.1} parent=5 // pred_check_branch
        %472 = sbr.rel (%p470) target = $region56
      $region55: #{tpu_custom_call.1} parent=5 // pred_region
        %s473 = ssub.s32 %s19, 2
        // Predicated region
        $region57: #{tpu_custom_call.1} parent=55 // pred_check
          %p474 = pneg %p142
        $region58: #{tpu_custom_call.1} parent=55 // pred_check_branch
          %476 = sbr.rel (%p474) target = $region60
        $region59: #{tpu_custom_call.1} parent=55 // pred_region
          %s477 = sand.u32 %s127, 1
          %s478 = scalar_lea.sflag [#allocation4], %s477
          %s479 = sand.u32 %s127, 1
          %s480 = smul.addr %s479, 16
          %s481 = scalar_lea.vmem [#allocation8], %s480
          %482 = dma.done %s478, 256
        $region60: #{tpu_custom_call.1} parent=55 // pred_fallthru
          _
      $region56: #{tpu_custom_call.1} parent=5 // pred_fallthru
        _
    $region6: #{tpu_custom_call.1} parent=1 // loop_footer
      %s23 = sadd.s32 1, %s19
    $region7: #{tpu_custom_call.1} parent=1 // loop_footer_branch
      %18 = sbr.rel target = $region3
    $region8: #{tpu_custom_call.1} parent=1 // loop_exit
      _
    %483 = vsyncpa [#allocation3], 1
    %s484 = scalar_lea.sflag [#allocation3], 1
    %485 = vsyncpa %s484, 1
    %486 = vsyncpa [#allocation6], 1
    %s487 = scalar_lea.sflag [#allocation6], 1
    %488 = vsyncpa %s487, 1
    %489 = vsyncpa [#allocation4], 1
    %s490 = scalar_lea.sflag [#allocation4], 1
    %491 = vsyncpa %s490, 1

</llo_original>
